<compile_context>
chip_gen: v6e
topology: v6e:2x2x1
jax: 0.10.0
libtpu: 0.0.40
codegen_flags: <defaults>
</compile_context>

<pallas_src>
import functools

import jax
import jax.numpy as jnp
from jax.experimental import pallas as pl
from jax.experimental.pallas import tpu as pltpu

BN_EPS = 1e-5
LAYER_DIMS = [(8, 512), (512, 256), (256, 128), (128, 64), (64, 4)]
IN_DIM = LAYER_DIMS[0][0]
OUT_DIM = LAYER_DIMS[-1][1]
DEFAULT_TB = 4096                      # batch tile (rows); multiple of 8
VMEM_LIMIT_BYTES = 48 * 1024 * 1024    # v7x-safe (64 MiB/TC), fine on v5e/v6e


def _mlp_kernel(
    x_ref,
    w1_ref, b1_ref,
    w2_ref, b2_ref,
    w3_ref, b3_ref,
    w4_ref, b4_ref,
    w5_ref, b5_ref,
    o_ref,
):
    """Fused 5-layer MLP on one (TB, 8) batch tile.

    Weights are bf16 (MXU operands) with BN pre-folded; accumulation, bias
    and ReLU are f32.
    """
    h = x_ref[...]  # (TB, 8) f32

    def hidden_layer(h, w_ref, b_ref):
        z = jnp.dot(h.astype(jnp.bfloat16), w_ref[...],
                    preferred_element_type=jnp.float32)
        z = z + b_ref[...]            # bias (BN shift already folded in), f32
        return jnp.maximum(z, 0.0)    # ReLU, f32

    h = hidden_layer(h, w1_ref, b1_ref)
    h = hidden_layer(h, w2_ref, b2_ref)
    h = hidden_layer(h, w3_ref, b3_ref)
    h = hidden_layer(h, w4_ref, b4_ref)

    # Final Linear(64, 4) (includes BN4's folded affine). Narrow (4-lane)
    # store: masked vst cost is negligible vs the MXU work per tile.
    out = jnp.dot(h.astype(jnp.bfloat16), w5_ref[...],
                  preferred_element_type=jnp.float32) + b5_ref[...]
    o_ref[...] = out.astype(o_ref.dtype)


def init_params(key):
    """Deterministic parameter init (shapes match the PyTorch module)."""
    params = {}
    for li, (din, dout) in enumerate(LAYER_DIMS):
        key, kw, kb = jax.random.split(key, 3)
        bound = 1.0 / (din ** 0.5)
        # PyTorch nn.Linear convention: weight (out, in), bias (out,)
        params[f"w{li}"] = jax.random.uniform(
            kw, (dout, din), jnp.float32, minval=-bound, maxval=bound)
        params[f"b{li}"] = jax.random.uniform(
            kb, (dout,), jnp.float32, minval=-bound, maxval=bound)
    # BatchNorm params for the 4 hidden layers
    for li, (_, dout) in enumerate(LAYER_DIMS[:4]):
        key, kg, kbeta, km, kv = jax.random.split(key, 5)
        params[f"bn_gamma{li}"] = jax.random.uniform(
            kg, (dout,), jnp.float32, minval=0.5, maxval=1.5)
        params[f"bn_beta{li}"] = jax.random.normal(kbeta, (dout,), jnp.float32) * 0.1
        params[f"bn_mean{li}"] = jax.random.normal(km, (dout,), jnp.float32) * 0.1
        params[f"bn_var{li}"] = jax.random.uniform(
            kv, (dout,), jnp.float32, minval=0.5, maxval=1.5)
    return params


def fold_params(params):
    """One-time parameter prep (outside the per-call hot path).

    Transposes weights to (in, out), folds each BN's eval-mode affine into
    the NEXT layer's weights/bias, then casts weights to bf16.
    Returns the flat tuple of kernel operands (order matches _mlp_kernel).
    """
    folded = []
    prev_scale = None
    prev_shift = None
    for li, (din, dout) in enumerate(LAYER_DIMS):
        w = params[f"w{li}"].T.astype(jnp.float32)       # (in, out)
        b = params[f"b{li}"].astype(jnp.float32)         # (out,)
        if prev_scale is not None:
            # (a*s + t) @ W + b  ==  a @ (s[:,None]*W) + (t @ W + b)
            b = b + prev_shift @ w
            w = prev_scale[:, None] * w
        if li < 4:
            gamma = params[f"bn_gamma{li}"]
            beta = params[f"bn_beta{li}"]
            mean = params[f"bn_mean{li}"]
            var = params[f"bn_var{li}"]
            prev_scale = gamma / jnp.sqrt(var + BN_EPS)
            prev_shift = beta - mean * prev_scale
        folded += [w.astype(jnp.bfloat16), b[None, :].astype(jnp.float32)]
    return tuple(folded)


def _choose_tile(b_pad8: int, tile_batch: int) -> int:
    """Static (Python-int) batch-tile selection."""
    tile_batch = max(8, (tile_batch // 8) * 8)
    if b_pad8 > tile_batch:
        return tile_batch          # >= 2 grid steps -> megacore split on v7x
    # Everything fits in one tile; split into two grid steps only when each
    # step still has enough rows to amortize the ~0.35us/step overhead.
    if b_pad8 >= 4096:
        return ((b_pad8 // 2 + 7) // 8) * 8
    return b_pad8


def _const_spec(arr):
    """VMEM-resident parameter: constant block index, single-buffered."""
    try:
        return pl.BlockSpec(arr.shape, lambda i: (0, 0),
                            pipeline_mode=pl.Buffered(1))
    except TypeError:  # older jax without pipeline_mode kwarg
        return pl.BlockSpec(arr.shape, lambda i: (0, 0))


@functools.partial(jax.jit, static_argnames=("tile_batch",))
def neural_network_forward(x, folded_params, tile_batch=DEFAULT_TB):
    """Pallas-backed eval-mode forward pass of NeuralNetwork.

    x: (B, 8) float32.  folded_params: output of fold_params().
    Returns (B, 4) float32 logits.
    """
    B = x.shape[0]
    b_pad8 = ((B + 7) // 8) * 8
    tb = _choose_tile(b_pad8, tile_batch)
    b_padded = ((b_pad8 + tb - 1) // tb) * tb
    if b_padded != B:
        x = jnp.pad(x, ((0, b_padded - B), (0, 0)))
    grid = (b_padded // tb,)

    # Activation tiles march over the batch; parameters stay resident.
    x_spec = pl.BlockSpec((tb, IN_DIM), lambda i: (i, 0))
    out_spec = pl.BlockSpec((tb, OUT_DIM), lambda i: (i, 0))
    in_specs = [x_spec] + [_const_spec(p) for p in folded_params]

    out = pl.pallas_call(
        _mlp_kernel,
        out_shape=jax.ShapeDtypeStruct((b_padded, OUT_DIM), jnp.float32),
        grid=grid,
        in_specs=in_specs,
        out_specs=out_spec,
        compiler_params=pltpu.CompilerParams(
            dimension_semantics=("parallel",),
            vmem_limit_bytes=VMEM_LIMIT_BYTES,
        ),
    )(x, *folded_params)

    if b_padded != B:
        out = out[:B]
    return out


def _reference_forward_f32(x, params):
    """Plain-JAX f32 eval-mode reference (unfolded BN), matches the module."""
    h = x
    for li in range(5):
        h = h @ params[f"w{li}"].T + params[f"b{li}"]
        if li < 4:
            h = jnp.maximum(h, 0.0)
            scale = params[f"bn_gamma{li}"] / jnp.sqrt(params[f"bn_var{li}"] + BN_EPS)
            shift = params[f"bn_beta{li}"] - params[f"bn_mean{li}"] * scale
            h = h * scale + shift
    return h


def _reference_forward_folded(x, folded):
    """Plain-JAX reference with the exact folded/mixed precision of the kernel."""
    h = x
    for li in range(5):
        w = folded[2 * li]
        b = folded[2 * li + 1]
        h = jnp.dot(h.astype(jnp.bfloat16), w,
                    preferred_element_type=jnp.float32) + b
        if li < 4:
            h = jnp.maximum(h, 0.0)
    return h


if __name__ == "__main__":
    key = jax.random.PRNGKey(0)
    kp, kx = jax.random.split(key)
    params = init_params(kp)
    folded = fold_params(params)

    batch = 8
    x = jax.random.normal(kx, (batch, 8), jnp.float32)

    out = neural_network_forward(x, folded)
    out = jax.block_until_ready(out)
    assert out.shape == (batch, 4)

    # Tight check against a plain-JAX run of the same folded mixed-precision math.
    ref_folded = _reference_forward_folded(x, folded)
    assert jnp.allclose(out, ref_folded, atol=2e-3, rtol=2e-3), \
        "mismatch vs folded mixed-precision reference"

    # Semantic check against the full-f32, unfolded eval-mode module math
    # (looser tolerance to cover bf16 weight rounding through 5 layers).
    ref_f32 = _reference_forward_f32(x, params)
    assert jnp.allclose(out, ref_f32, atol=5e-2, rtol=5e-2), \
        "mismatch vs f32 module reference"

    print("KERNEL_OK")
</pallas_src>

<mosaic_0001>
module attributes {stable_mosaic.version = 11 : i64} {
  func.func @_mlp_kernel(%arg0: i32, %arg1: memref<8x8xf32, #tpu.memory_space<vmem>>, %arg2: memref<8x512xbf16, #tpu.memory_space<vmem>>, %arg3: memref<1x512xf32, #tpu.memory_space<vmem>>, %arg4: memref<512x256xbf16, #tpu.memory_space<vmem>>, %arg5: memref<1x256xf32, #tpu.memory_space<vmem>>, %arg6: memref<256x128xbf16, #tpu.memory_space<vmem>>, %arg7: memref<1x128xf32, #tpu.memory_space<vmem>>, %arg8: memref<128x64xbf16, #tpu.memory_space<vmem>>, %arg9: memref<1x64xf32, #tpu.memory_space<vmem>>, %arg10: memref<64x4xbf16, #tpu.memory_space<vmem>>, %arg11: memref<1x4xf32, #tpu.memory_space<vmem>>, %arg12: memref<8x4xf32, #tpu.memory_space<vmem>>) attributes {dimension_semantics = [#tpu.dimension_semantics<parallel>], iteration_bounds = array<i64: 1>, scalar_prefetch = 0 : i64, scratch_operands = 0 : i64, tpu.core_type = #tpu.core_type<tc>, window_params = [{transform_indices = @transform_0, window_bounds = array<i64: 8, 8>}, {pipeline_mode = #tpu.pipeline_mode<synchronous>, transform_indices = @transform_1, window_bounds = array<i64: 8, 512>}, {pipeline_mode = #tpu.pipeline_mode<synchronous>, transform_indices = @transform_2, window_bounds = array<i64: 1, 512>}, {pipeline_mode = #tpu.pipeline_mode<synchronous>, transform_indices = @transform_3, window_bounds = array<i64: 512, 256>}, {pipeline_mode = #tpu.pipeline_mode<synchronous>, transform_indices = @transform_4, window_bounds = array<i64: 1, 256>}, {pipeline_mode = #tpu.pipeline_mode<synchronous>, transform_indices = @transform_5, window_bounds = array<i64: 256, 128>}, {pipeline_mode = #tpu.pipeline_mode<synchronous>, transform_indices = @transform_6, window_bounds = array<i64: 1, 128>}, {pipeline_mode = #tpu.pipeline_mode<synchronous>, transform_indices = @transform_7, window_bounds = array<i64: 128, 64>}, {pipeline_mode = #tpu.pipeline_mode<synchronous>, transform_indices = @transform_8, window_bounds = array<i64: 1, 64>}, {pipeline_mode = #tpu.pipeline_mode<synchronous>, transform_indices = @transform_9, window_bounds = array<i64: 64, 4>}, {pipeline_mode = #tpu.pipeline_mode<synchronous>, transform_indices = @transform_10, window_bounds = array<i64: 1, 4>}, {transform_indices = @transform_11, window_bounds = array<i64: 8, 4>}]} {
    %c0 = arith.constant 0 : index
    %c0_0 = arith.constant 0 : index
    %0 = vector.load %arg1[%c0, %c0_0] : memref<8x8xf32, #tpu.memory_space<vmem>>, vector<8x8xf32>
    %1 = arith.truncf %0 : vector<8x8xf32> to vector<8x8xbf16>
    %c0_1 = arith.constant 0 : index
    %c0_2 = arith.constant 0 : index
    %2 = vector.load %arg2[%c0_1, %c0_2] : memref<8x512xbf16, #tpu.memory_space<vmem>>, vector<8x512xbf16>
    %cst = arith.constant dense<0.000000e+00> : vector<8x512xf32>
    %3 = tpu.matmul %1, %2, %cst {dimension_numbers = #tpu.dot_dimension_numbers<[1], [0], [0], [1], [0, 0, 1, 1], [], []>} : vector<8x8xbf16>, vector<8x512xbf16>, vector<8x512xf32> -> vector<8x512xf32>
    %c0_3 = arith.constant 0 : index
    %c0_4 = arith.constant 0 : index
    %4 = vector.load %arg3[%c0_3, %c0_4] : memref<1x512xf32, #tpu.memory_space<vmem>>, vector<1x512xf32>
    %5 = vector.broadcast %4 : vector<1x512xf32> to vector<8x512xf32>
    %6 = arith.addf %3, %5 : vector<8x512xf32>
    %cst_5 = arith.constant 0.000000e+00 : f32
    %7 = vector.broadcast %cst_5 : f32 to vector<8x512xf32>
    %8 = arith.maximumf %6, %7 : vector<8x512xf32>
    %9 = arith.truncf %8 : vector<8x512xf32> to vector<8x512xbf16>
    %c0_6 = arith.constant 0 : index
    %c0_7 = arith.constant 0 : index
    %10 = vector.load %arg4[%c0_6, %c0_7] : memref<512x256xbf16, #tpu.memory_space<vmem>>, vector<512x256xbf16>
    %cst_8 = arith.constant dense<0.000000e+00> : vector<8x256xf32>
    %11 = tpu.matmul %9, %10, %cst_8 {dimension_numbers = #tpu.dot_dimension_numbers<[1], [0], [0], [1], [0, 0, 1, 1], [], []>} : vector<8x512xbf16>, vector<512x256xbf16>, vector<8x256xf32> -> vector<8x256xf32>
    %c0_9 = arith.constant 0 : index
    %c0_10 = arith.constant 0 : index
    %12 = vector.load %arg5[%c0_9, %c0_10] : memref<1x256xf32, #tpu.memory_space<vmem>>, vector<1x256xf32>
    %13 = vector.broadcast %12 : vector<1x256xf32> to vector<8x256xf32>
    %14 = arith.addf %11, %13 : vector<8x256xf32>
    %cst_11 = arith.constant 0.000000e+00 : f32
    %15 = vector.broadcast %cst_11 : f32 to vector<8x256xf32>
    %16 = arith.maximumf %14, %15 : vector<8x256xf32>
    %17 = arith.truncf %16 : vector<8x256xf32> to vector<8x256xbf16>
    %c0_12 = arith.constant 0 : index
    %c0_13 = arith.constant 0 : index
    %18 = vector.load %arg6[%c0_12, %c0_13] : memref<256x128xbf16, #tpu.memory_space<vmem>>, vector<256x128xbf16>
    %cst_14 = arith.constant dense<0.000000e+00> : vector<8x128xf32>
    %19 = tpu.matmul %17, %18, %cst_14 {dimension_numbers = #tpu.dot_dimension_numbers<[1], [0], [0], [1], [0, 0, 1, 1], [], []>} : vector<8x256xbf16>, vector<256x128xbf16>, vector<8x128xf32> -> vector<8x128xf32>
    %c0_15 = arith.constant 0 : index
    %c0_16 = arith.constant 0 : index
    %20 = vector.load %arg7[%c0_15, %c0_16] : memref<1x128xf32, #tpu.memory_space<vmem>>, vector<1x128xf32>
    %21 = vector.broadcast %20 : vector<1x128xf32> to vector<8x128xf32>
    %22 = arith.addf %19, %21 : vector<8x128xf32>
    %cst_17 = arith.constant 0.000000e+00 : f32
    %23 = vector.broadcast %cst_17 : f32 to vector<8x128xf32>
    %24 = arith.maximumf %22, %23 : vector<8x128xf32>
    %25 = arith.truncf %24 : vector<8x128xf32> to vector<8x128xbf16>
    %c0_18 = arith.constant 0 : index
    %c0_19 = arith.constant 0 : index
    %26 = vector.load %arg8[%c0_18, %c0_19] : memref<128x64xbf16, #tpu.memory_space<vmem>>, vector<128x64xbf16>
    %cst_20 = arith.constant dense<0.000000e+00> : vector<8x64xf32>
    %27 = tpu.matmul %25, %26, %cst_20 {dimension_numbers = #tpu.dot_dimension_numbers<[1], [0], [0], [1], [0, 0, 1, 1], [], []>} : vector<8x128xbf16>, vector<128x64xbf16>, vector<8x64xf32> -> vector<8x64xf32>
    %c0_21 = arith.constant 0 : index
    %c0_22 = arith.constant 0 : index
    %28 = vector.load %arg9[%c0_21, %c0_22] : memref<1x64xf32, #tpu.memory_space<vmem>>, vector<1x64xf32>
    %29 = vector.broadcast %28 : vector<1x64xf32> to vector<8x64xf32>
    %30 = arith.addf %27, %29 : vector<8x64xf32>
    %cst_23 = arith.constant 0.000000e+00 : f32
    %31 = vector.broadcast %cst_23 : f32 to vector<8x64xf32>
    %32 = arith.maximumf %30, %31 : vector<8x64xf32>
    %33 = arith.truncf %32 : vector<8x64xf32> to vector<8x64xbf16>
    %c0_24 = arith.constant 0 : index
    %c0_25 = arith.constant 0 : index
    %34 = vector.load %arg10[%c0_24, %c0_25] : memref<64x4xbf16, #tpu.memory_space<vmem>>, vector<64x4xbf16>
    %cst_26 = arith.constant dense<0.000000e+00> : vector<8x4xf32>
    %35 = tpu.matmul %33, %34, %cst_26 {dimension_numbers = #tpu.dot_dimension_numbers<[1], [0], [0], [1], [0, 0, 1, 1], [], []>} : vector<8x64xbf16>, vector<64x4xbf16>, vector<8x4xf32> -> vector<8x4xf32>
    %c0_27 = arith.constant 0 : index
    %c0_28 = arith.constant 0 : index
    %36 = vector.load %arg11[%c0_27, %c0_28] : memref<1x4xf32, #tpu.memory_space<vmem>>, vector<1x4xf32>
    %37 = vector.broadcast %36 : vector<1x4xf32> to vector<8x4xf32>
    %38 = arith.addf %35, %37 : vector<8x4xf32>
    %c0_29 = arith.constant 0 : index
    %c0_30 = arith.constant 0 : index
    %39 = vector.load %arg12[%c0_29, %c0_30] : memref<8x4xf32, #tpu.memory_space<vmem>>, vector<8x4xf32>
    tpu.vector_store %arg12[%c0_29, %c0_30], %38 {strides = array<i32>} : memref<8x4xf32, #tpu.memory_space<vmem>>, vector<8x4xf32>,
    return
  }
  func.func @transform_0(%arg0: i32) -> (i32, i32) {
    %c0_i32 = arith.constant 0 : i32
    %c0_i32_0 = arith.constant 0 : i32
    return %arg0, %c0_i32 : i32, i32
  }
  func.func @transform_1(%arg0: i32) -> (i32, i32) {
    %c0_i32 = arith.constant 0 : i32
    %c0_i32_0 = arith.constant 0 : i32
    %c0_i32_1 = arith.constant 0 : i32
    return %c0_i32, %c0_i32_0 : i32, i32
  }
  func.func @transform_2(%arg0: i32) -> (i32, i32) {
    %c0_i32 = arith.constant 0 : i32
    %c0_i32_0 = arith.constant 0 : i32
    %c0_i32_1 = arith.constant 0 : i32
    return %c0_i32, %c0_i32_0 : i32, i32
  }
  func.func @transform_3(%arg0: i32) -> (i32, i32) {
    %c0_i32 = arith.constant 0 : i32
    %c0_i32_0 = arith.constant 0 : i32
    %c0_i32_1 = arith.constant 0 : i32
    return %c0_i32, %c0_i32_0 : i32, i32
  }
  func.func @transform_4(%arg0: i32) -> (i32, i32) {
    %c0_i32 = arith.constant 0 : i32
    %c0_i32_0 = arith.constant 0 : i32
    %c0_i32_1 = arith.constant 0 : i32
    return %c0_i32, %c0_i32_0 : i32, i32
  }
  func.func @transform_5(%arg0: i32) -> (i32, i32) {
    %c0_i32 = arith.constant 0 : i32
    %c0_i32_0 = arith.constant 0 : i32
    %c0_i32_1 = arith.constant 0 : i32
    return %c0_i32, %c0_i32_0 : i32, i32
  }
  func.func @transform_6(%arg0: i32) -> (i32, i32) {
    %c0_i32 = arith.constant 0 : i32
    %c0_i32_0 = arith.constant 0 : i32
    %c0_i32_1 = arith.constant 0 : i32
    return %c0_i32, %c0_i32_0 : i32, i32
  }
  func.func @transform_7(%arg0: i32) -> (i32, i32) {
    %c0_i32 = arith.constant 0 : i32
    %c0_i32_0 = arith.constant 0 : i32
    %c0_i32_1 = arith.constant 0 : i32
    return %c0_i32, %c0_i32_0 : i32, i32
  }
  func.func @transform_8(%arg0: i32) -> (i32, i32) {
    %c0_i32 = arith.constant 0 : i32
    %c0_i32_0 = arith.constant 0 : i32
    %c0_i32_1 = arith.constant 0 : i32
    return %c0_i32, %c0_i32_0 : i32, i32
  }
  func.func @transform_9(%arg0: i32) -> (i32, i32) {
    %c0_i32 = arith.constant 0 : i32
    %c0_i32_0 = arith.constant 0 : i32
    %c0_i32_1 = arith.constant 0 : i32
    return %c0_i32, %c0_i32_0 : i32, i32
  }
  func.func @transform_10(%arg0: i32) -> (i32, i32) {
    %c0_i32 = arith.constant 0 : i32
    %c0_i32_0 = arith.constant 0 : i32
    %c0_i32_1 = arith.constant 0 : i32
    return %c0_i32, %c0_i32_0 : i32, i32
  }
  func.func @transform_11(%arg0: i32) -> (i32, i32) {
    %c0_i32 = arith.constant 0 : i32
    %c0_i32_0 = arith.constant 0 : i32
    return %arg0, %c0_i32 : i32, i32
  }
}

</mosaic_0001>

<llo_original>
// kernel: neural_network_forward.1
$region0: #{neural_network_forward.1}
  #allocation0 [shape = 'u32[]', space=smem, size = 0x4, offset = 0x4, fixed_abs, tag = 'smem constant byte address 0x4 - core index']
  #allocation1 [shape = 'u32[144,128]{1,0:T(1,128)}', space=vmem, size = 0x12000, scoped, tag = 'internal scratch']
  %s0 = inlined_call_operand.vmem [shape: f32[8,8], index: 0, kind: input, shape index: {}]
  %s1 = inlined_call_operand.hbm [shape: bf16[8,512], index: 1, kind: input, shape index: {}]
  %s2 = inlined_call_operand.hbm [shape: f32[1,512], index: 2, kind: input, shape index: {}]
  %s3 = inlined_call_operand.hbm [shape: bf16[512,256], index: 3, kind: input, shape index: {}]
  %s4 = inlined_call_operand.vmem [shape: f32[1,256], index: 4, kind: input, shape index: {}]
  %s5 = inlined_call_operand.vmem [shape: bf16[256,128], index: 5, kind: input, shape index: {}]
  %s6 = inlined_call_operand.hbm [shape: f32[1,128], index: 6, kind: input, shape index: {}]
  %s7 = inlined_call_operand.vmem [shape: bf16[128,64], index: 7, kind: input, shape index: {}]
  %s8 = inlined_call_operand.vmem [shape: f32[1,64], index: 8, kind: input, shape index: {}]
  %s9 = inlined_call_operand.vmem [shape: bf16[64,4], index: 9, kind: input, shape index: {}]
  %s10 = inlined_call_operand.vmem [shape: f32[1,4], index: 10, kind: input, shape index: {}]
  %s11 = inlined_call_operand.vmem [shape: f32[8,4], index: 11, kind: output, shape index: {}]
  %s12 = sld [smem:[#allocation0]]
  $region70: #{neural_network_forward.1} parent=0
    _
  %s14 = ssub.s32 1, %s12
  %s15 = scalar_select 0, %s14, %s12
  $region1: #{neural_network_forward.1} parent=0
    #allocation2 [shape = 'u8[8192]{0}', space=vmem, size = 0x2000, scoped, tag = 'input window, operand 1, single buffered']
    #allocation3 [shape = 's32[1]{0}', space=sflag, size = 0x4, scoped, tag = 'scoped memory for neural_network_forward.1']
    #allocation4 [shape = 'u8[2048]{0}', space=vmem, size = 0x800, scoped, tag = 'input window, operand 2, single buffered']
    #allocation5 [shape = 's32[1]{0}', space=sflag, size = 0x4, scoped, tag = 'scoped memory for neural_network_forward.1']
    #allocation6 [shape = 'u8[262144]{0}', space=vmem, size = 0x40000, scoped, tag = 'input window, operand 3, single buffered']
    #allocation7 [shape = 'u8[512]{0}', space=vmem, size = 0x400, scoped, tag = 'input window, operand 6, single buffered']
    #allocation8 [shape = 's32[1]{0}', space=sflag, size = 0x4, scoped, tag = 'scoped memory for neural_network_forward.1']
    %16 = vsyncpa [#allocation3], 0
    %17 = vsyncpa [#allocation5], 0
    %18 = vsyncpa [#allocation8], 0
    // Predicated region
    $region2: #{neural_network_forward.1} parent=1 // pred_check
      _
    $region3: #{neural_network_forward.1} parent=1 // pred_check_branch
      %20 = sbr.rel (0) target = $region5
    $region4: #{neural_network_forward.1} parent=1 // pred_region
      _
    $region5: #{neural_network_forward.1} parent=1 // pred_fallthru
      _
    // Predicated region
    $region6: #{neural_network_forward.1} parent=1 // pred_check
      _
    $region7: #{neural_network_forward.1} parent=1 // pred_check_branch
      %22 = sbr.rel (0) target = $region9
    $region8: #{neural_network_forward.1} parent=1 // pred_region
      %s24 = ssub.s32 256, 256
      %25 = vsyncadd [#allocation3], %s24
      %s27 = sshll.u32 [#allocation2], 4
      %s28 = int_to_ptr.vmem [resolvable:$true] %s27
      %30 = dma.hbm_to_vmem [thread:$0]  %s1, 256, %s28, [#allocation3]
    $region9: #{neural_network_forward.1} parent=1 // pred_fallthru
      _
    // Predicated region
    $region10: #{neural_network_forward.1} parent=1 // pred_check
      _
    $region11: #{neural_network_forward.1} parent=1 // pred_check_branch
      %32 = sbr.rel (0) target = $region13
    $region12: #{neural_network_forward.1} parent=1 // pred_region
      %s34 = ssub.s32 64, 64
      %35 = vsyncadd [#allocation5], %s34
      %s37 = sshll.u32 [#allocation4], 4
      %s38 = int_to_ptr.vmem [resolvable:$true] %s37
      %40 = dma.hbm_to_vmem [thread:$0]  %s2, 64, %s38, [#allocation5]
    $region13: #{neural_network_forward.1} parent=1 // pred_fallthru
      _
    // Predicated region
    $region14: #{neural_network_forward.1} parent=1 // pred_check
      _
    $region15: #{neural_network_forward.1} parent=1 // pred_check_branch
      %42 = sbr.rel (0) target = $region17
    $region16: #{neural_network_forward.1} parent=1 // pred_region
      %s44 = ssub.s32 8192, 8192
      %45 = vsyncadd [#allocation5], %s44
      %s46 = sshll.u32 [#allocation6], 4
      %s47 = int_to_ptr.vmem [resolvable:$true] %s46
      %52 = dma.hbm_to_vmem [thread:$0]  %s3, 8192, %s47, [#allocation5], 128, 128, 8
    $region17: #{neural_network_forward.1} parent=1 // pred_fallthru
      _
    // Predicated region
    $region18: #{neural_network_forward.1} parent=1 // pred_check
      _
    $region19: #{neural_network_forward.1} parent=1 // pred_check_branch
      %54 = sbr.rel (0) target = $region21
    $region20: #{neural_network_forward.1} parent=1 // pred_region
      _
    $region21: #{neural_network_forward.1} parent=1 // pred_fallthru
      _
    // Predicated region
    $region22: #{neural_network_forward.1} parent=1 // pred_check
      _
    $region23: #{neural_network_forward.1} parent=1 // pred_check_branch
      %56 = sbr.rel (0) target = $region25
    $region24: #{neural_network_forward.1} parent=1 // pred_region
      _
    $region25: #{neural_network_forward.1} parent=1 // pred_fallthru
      _
    // Predicated region
    $region26: #{neural_network_forward.1} parent=1 // pred_check
      _
    $region27: #{neural_network_forward.1} parent=1 // pred_check_branch
      %58 = sbr.rel (0) target = $region29
    $region28: #{neural_network_forward.1} parent=1 // pred_region
      %s60 = ssub.s32 16, 16
      %61 = vsyncadd [#allocation8], %s60
      %s63 = sshll.u32 [#allocation7], 4
      %s64 = int_to_ptr.vmem [resolvable:$true] %s63
      %66 = dma.hbm_to_vmem [thread:$0]  %s6, 16, %s64, [#allocation8]
    $region29: #{neural_network_forward.1} parent=1 // pred_fallthru
      _
    // Predicated region
    $region30: #{neural_network_forward.1} parent=1 // pred_check
      _
    $region31: #{neural_network_forward.1} parent=1 // pred_check_branch
      %68 = sbr.rel (0) target = $region33
    $region32: #{neural_network_forward.1} parent=1 // pred_region
      _
    $region33: #{neural_network_forward.1} parent=1 // pred_fallthru
      _
    // Predicated region
    $region34: #{neural_network_forward.1} parent=1 // pred_check
      _
    $region35: #{neural_network_forward.1} parent=1 // pred_check_branch
      %70 = sbr.rel (0) target = $region37
    $region36: #{neural_network_forward.1} parent=1 // pred_region
      _
    $region37: #{neural_network_forward.1} parent=1 // pred_fallthru
      _
    // Predicated region
    $region38: #{neural_network_forward.1} parent=1 // pred_check
      _
    $region39: #{neural_network_forward.1} parent=1 // pred_check_branch
      %72 = sbr.rel (0) target = $region41
    $region40: #{neural_network_forward.1} parent=1 // pred_region
      _
    $region41: #{neural_network_forward.1} parent=1 // pred_fallthru
      _
    // Predicated region
    $region42: #{neural_network_forward.1} parent=1 // pred_check
      _
    $region43: #{neural_network_forward.1} parent=1 // pred_check_branch
      %74 = sbr.rel (0) target = $region45
    $region44: #{neural_network_forward.1} parent=1 // pred_region
      _
    $region45: #{neural_network_forward.1} parent=1 // pred_fallthru
      _
    // Predicated region
    $region46: #{neural_network_forward.1} parent=1 // pred_check
      _
    $region47: #{neural_network_forward.1} parent=1 // pred_check_branch
      %76 = sbr.rel (0) target = $region49
    $region48: #{neural_network_forward.1} parent=1 // pred_region
      %77 = dma.done [#allocation3], 256
    $region49: #{neural_network_forward.1} parent=1 // pred_fallthru
      _
    // Predicated region
    $region50: #{neural_network_forward.1} parent=1 // pred_check
      _
    $region51: #{neural_network_forward.1} parent=1 // pred_check_branch
      %79 = sbr.rel (0) target = $region53
    $region52: #{neural_network_forward.1} parent=1 // pred_region
      %80 = dma.done [#allocation5], 64
    $region53: #{neural_network_forward.1} parent=1 // pred_fallthru
      _
    // Predicated region
    $region54: #{neural_network_forward.1} parent=1 // pred_check
      _
    $region55: #{neural_network_forward.1} parent=1 // pred_check_branch
      %82 = sbr.rel (0) target = $region57
    $region56: #{neural_network_forward.1} parent=1 // pred_region
      %83 = dma.done [#allocation5], 8192
    $region57: #{neural_network_forward.1} parent=1 // pred_fallthru
      _
    // Predicated region
    $region58: #{neural_network_forward.1} parent=1 // pred_check
      _
    $region59: #{neural_network_forward.1} parent=1 // pred_check_branch
      %85 = sbr.rel (0) target = $region61
    $region60: #{neural_network_forward.1} parent=1 // pred_region
      %86 = dma.done [#allocation8], 16
    $region61: #{neural_network_forward.1} parent=1 // pred_fallthru
      _
    %v88 = vld [vmem:[%s0] sm:$0xff]
    %v89 = vpack.c.bf16 %v88, %v88
    %v90 = vld [vmem:[#allocation2] sm:$0xff]
    %v91 = vld [vmem:[#allocation2 + $0x8] sm:$0xff]
    %v92 = vld [vmem:[#allocation4] sm:$0xf]
    %v94 = vlaneseq
    %v95 = vshrl.u32 %v94, 7
    %v96 = vsub.s32 0, %v95
    %v97 = vrot.slane %v92, %v96
    %v98 = vlaneseq
    %v99 = vshrl.u32 %v98, 7
    %v100 = vsub.s32 1, %v99
    %v101 = vrot.slane %v92, %v100
    %v102 = vlaneseq
    %v103 = vshrl.u32 %v102, 7
    %v104 = vsub.s32 2, %v103
    %v105 = vrot.slane %v92, %v104
    %v106 = vlaneseq
    %v107 = vshrl.u32 %v106, 7
    %v108 = vsub.s32 3, %v107
    %v109 = vrot.slane %v92, %v108
    %v116 = vunpack.c.l.b16 %v90
    %v117 = vunpack.c.h.b16 %v90
    %v118 = vunpack.c.l.b16 %v91
    %v119 = vunpack.c.h.b16 %v91
    %v120 = vpack.c.b16 %v116, %v116
    %v121 = vpack.c.b16 %v117, %v117
    %v122 = vpack.c.b16 %v118, %v118
    %v123 = vpack.c.b16 %v119, %v119
    %vm124 = vcmask 64512
    %v126 = vsel %vm124, %v89, 0
    %vm128 = vcmask 1043456
    %v130 = vsel %vm128, %v120, 0
    %v133 = vsel %vm128, %v121, 0
    %v136 = vsel %vm128, %v122, 0
    %v139 = vsel %vm128, %v123, 0
    %141 = vmatprep.subr.bf16.mxu0 0
    %142 = vmatpush1.bf16.msra.mxu0 0
    %143 = vmatprep.subr.bf16.mxu0 0
    %144 = vmatpush1.bf16.msra.mxu0 0
    %145 = vmatprep.subr.bf16.mxu0 0
    %146 = vmatpush1.bf16.msra.mxu0 0
    %147 = vmatprep.subr.bf16.mxu0 0
    %148 = vmatpush1.bf16.msra.mxu0 0
    %149 = vmatprep.subr.bf16.mxu0 0
    %150 = vmatpush1.bf16.msra.mxu0 0
    %151 = vmatprep.subr.bf16.mxu0 0
    %152 = vmatpush1.bf16.msra.mxu0 0
    %153 = vmatprep.subr.bf16.mxu0 0
    %154 = vmatpush1.bf16.msra.mxu0 0
    %155 = vmatprep.subr.bf16.mxu0 %v133
    %156 = vmatpush1.bf16.msra.mxu0 %v130
    %157 = vmatprep.subr.bf16.mxu0 0
    %158 = vmatpush2.bf16.msra.mxu0 0
    %159 = vmatprep.subr.bf16.mxu0 0
    %160 = vmatpush2.bf16.msra.mxu0 0
    %161 = vmatprep.subr.bf16.mxu0 0
    %162 = vmatpush2.bf16.msra.mxu0 0
    %163 = vmatprep.subr.bf16.mxu0 0
    %164 = vmatpush2.bf16.msra.mxu0 0
    %165 = vmatprep.subr.bf16.mxu0 0
    %166 = vmatpush2.bf16.msra.mxu0 0
    %167 = vmatprep.subr.bf16.mxu0 0
    %168 = vmatpush2.bf16.msra.mxu0 0
    %169 = vmatprep.subr.bf16.mxu0 0
    %170 = vmatpush2.bf16.msra.mxu0 0
    %171 = vmatprep.subr.bf16.mxu0 0
    %172 = vmatpush2.bf16.msra.mxu0 0
    %173 = vmatprep.mubr.bf16.mxu0 0
    %174 = vmatmul.mubr.bf16.gmra.mxu0 %v126
    %v175 = vpop.f32.mrf.mxu0
    %v176 = vadd.f32 %v97, %v175
    %v177 = vpop.f32.mrf.mxu0
    %v178 = vadd.f32 %v101, %v177
    %v179 = vpop.f32.mrf.mxu0
    %v180 = vpop.f32.mrf.mxu0
    %181 = vdwg.mxu0
    %182 = vmatprep.subr.bf16.mxu0 0
    %183 = vmatpush1.bf16.msra.mxu0 0
    %184 = vmatprep.subr.bf16.mxu0 0
    %185 = vmatpush1.bf16.msra.mxu0 0
    %186 = vmatprep.subr.bf16.mxu0 0
    %187 = vmatpush1.bf16.msra.mxu0 0
    %188 = vmatprep.subr.bf16.mxu0 0
    %189 = vmatpush1.bf16.msra.mxu0 0
    %190 = vmatprep.subr.bf16.mxu0 0
    %191 = vmatpush1.bf16.msra.mxu0 0
    %192 = vmatprep.subr.bf16.mxu0 0
    %193 = vmatpush1.bf16.msra.mxu0 0
    %194 = vmatprep.subr.bf16.mxu0 0
    %195 = vmatpush1.bf16.msra.mxu0 0
    %196 = vmatprep.subr.bf16.mxu0 %v139
    %197 = vmatpush1.bf16.msra.mxu0 %v136
    %198 = vmatprep.subr.bf16.mxu0 0
    %199 = vmatpush2.bf16.msra.mxu0 0
    %200 = vmatprep.subr.bf16.mxu0 0
    %201 = vmatpush2.bf16.msra.mxu0 0
    %202 = vmatprep.subr.bf16.mxu0 0
    %203 = vmatpush2.bf16.msra.mxu0 0
    %204 = vmatprep.subr.bf16.mxu0 0
    %205 = vmatpush2.bf16.msra.mxu0 0
    %206 = vmatprep.subr.bf16.mxu0 0
    %207 = vmatpush2.bf16.msra.mxu0 0
    %208 = vmatprep.subr.bf16.mxu0 0
    %209 = vmatpush2.bf16.msra.mxu0 0
    %210 = vmatprep.subr.bf16.mxu0 0
    %211 = vmatpush2.bf16.msra.mxu0 0
    %212 = vmatprep.subr.bf16.mxu0 0
    %213 = vmatpush2.bf16.msra.mxu0 0
    %214 = vmatprep.mubr.bf16.mxu0 0
    %215 = vmatmul.mubr.bf16.gmra.mxu0 %v126
    %v216 = vpop.f32.mrf.mxu0
    %v217 = vadd.f32 %v105, %v216
    %v218 = vpop.f32.mrf.mxu0
    %v219 = vadd.f32 %v109, %v218
    %v220 = vpop.f32.mrf.mxu0
    %v221 = vpop.f32.mrf.mxu0
    %222 = vdwg.mxu0
    %v223 = vmax.f32 %v176, 0.0
    %v224 = vmax.f32 %v178, 0.0
    %v225 = vmax.f32 %v217, 0.0
    %v226 = vmax.f32 %v219, 0.0
    %v227 = vpack.c.bf16 %v223, %v223
    %v228 = vpack.c.bf16 %v224, %v224
    %v229 = vpack.c.bf16 %v225, %v225
    %v230 = vpack.c.bf16 %v226, %v226
    %v231 = vld [vmem:[#allocation6] sm:$0xff]
    %v232 = vld [vmem:[#allocation6 + $0x8] sm:$0xff]
    %v233 = vld [vmem:[#allocation6 + $0x10] sm:$0xff]
    %v234 = vld [vmem:[#allocation6 + $0x18] sm:$0xff]
    %v235 = vld [vmem:[#allocation6 + $0x20] sm:$0xff]
    %v236 = vld [vmem:[#allocation6 + $0x28] sm:$0xff]
    %v237 = vld [vmem:[#allocation6 + $0x30] sm:$0xff]
    %v238 = vld [vmem:[#allocation6 + $0x38] sm:$0xff]
    %v239 = vld [vmem:[#allocation6 + $0x40] sm:$0xff]
    %v240 = vld [vmem:[#allocation6 + $0x48] sm:$0xff]
    %v241 = vld [vmem:[#allocation6 + $0x50] sm:$0xff]
    %v242 = vld [vmem:[#allocation6 + $0x58] sm:$0xff]
    %v243 = vld [vmem:[#allocation6 + $0x60] sm:$0xff]
    %v244 = vld [vmem:[#allocation6 + $0x68] sm:$0xff]
    %v245 = vld [vmem:[#allocation6 + $0x70] sm:$0xff]
    %v246 = vld [vmem:[#allocation6 + $0x78] sm:$0xff]
    %v247 = vld [vmem:[#allocation6 + $0x80] sm:$0xff]
    %v248 = vld [vmem:[#allocation6 + $0x88] sm:$0xff]
    %v249 = vld [vmem:[#allocation6 + $0x90] sm:$0xff]
    %v250 = vld [vmem:[#allocation6 + $0x98] sm:$0xff]
    %v251 = vld [vmem:[#allocation6 + $0xa0] sm:$0xff]
    %v252 = vld [vmem:[#allocation6 + $0xa8] sm:$0xff]
    %v253 = vld [vmem:[#allocation6 + $0xb0] sm:$0xff]
    %v254 = vld [vmem:[#allocation6 + $0xb8] sm:$0xff]
    %v255 = vld [vmem:[#allocation6 + $0xc0] sm:$0xff]
    %v256 = vld [vmem:[#allocation6 + $0xc8] sm:$0xff]
    %v257 = vld [vmem:[#allocation6 + $0xd0] sm:$0xff]
    %v258 = vld [vmem:[#allocation6 + $0xd8] sm:$0xff]
    %v259 = vld [vmem:[#allocation6 + $0xe0] sm:$0xff]
    %v260 = vld [vmem:[#allocation6 + $0xe8] sm:$0xff]
    %v261 = vld [vmem:[#allocation6 + $0xf0] sm:$0xff]
    %v262 = vld [vmem:[#allocation6 + $0xf8] sm:$0xff]
    %v263 = vld [vmem:[#allocation6 + $0x100] sm:$0xff]
    %v264 = vld [vmem:[#allocation6 + $0x108] sm:$0xff]
    %v265 = vld [vmem:[#allocation6 + $0x110] sm:$0xff]
    %v266 = vld [vmem:[#allocation6 + $0x118] sm:$0xff]
    %v267 = vld [vmem:[#allocation6 + $0x120] sm:$0xff]
    %v268 = vld [vmem:[#allocation6 + $0x128] sm:$0xff]
    %v269 = vld [vmem:[#allocation6 + $0x130] sm:$0xff]
    %v270 = vld [vmem:[#allocation6 + $0x138] sm:$0xff]
    %v271 = vld [vmem:[#allocation6 + $0x140] sm:$0xff]
    %v272 = vld [vmem:[#allocation6 + $0x148] sm:$0xff]
    %v273 = vld [vmem:[#allocation6 + $0x150] sm:$0xff]
    %v274 = vld [vmem:[#allocation6 + $0x158] sm:$0xff]
    %v275 = vld [vmem:[#allocation6 + $0x160] sm:$0xff]
    %v276 = vld [vmem:[#allocation6 + $0x168] sm:$0xff]
    %v277 = vld [vmem:[#allocation6 + $0x170] sm:$0xff]
    %v278 = vld [vmem:[#allocation6 + $0x178] sm:$0xff]
    %v279 = vld [vmem:[#allocation6 + $0x180] sm:$0xff]
    %v280 = vld [vmem:[#allocation6 + $0x188] sm:$0xff]
    %v281 = vld [vmem:[#allocation6 + $0x190] sm:$0xff]
    %v282 = vld [vmem:[#allocation6 + $0x198] sm:$0xff]
    %v283 = vld [vmem:[#allocation6 + $0x1a0] sm:$0xff]
    %v284 = vld [vmem:[#allocation6 + $0x1a8] sm:$0xff]
    %v285 = vld [vmem:[#allocation6 + $0x1b0] sm:$0xff]
    %v286 = vld [vmem:[#allocation6 + $0x1b8] sm:$0xff]
    %v287 = vld [vmem:[#allocation6 + $0x1c0] sm:$0xff]
    %v288 = vld [vmem:[#allocation6 + $0x1c8] sm:$0xff]
    %v289 = vld [vmem:[#allocation6 + $0x1d0] sm:$0xff]
    %v290 = vld [vmem:[#allocation6 + $0x1d8] sm:$0xff]
    %v291 = vld [vmem:[#allocation6 + $0x1e0] sm:$0xff]
    %v292 = vld [vmem:[#allocation6 + $0x1e8] sm:$0xff]
    %v293 = vld [vmem:[#allocation6 + $0x1f0] sm:$0xff]
    %v294 = vld [vmem:[#allocation6 + $0x1f8] sm:$0xff]
    %v295 = vld [vmem:[%s4] sm:$0x3]
    %v297 = vlaneseq
    %v298 = vshrl.u32 %v297, 7
    %v299 = vsub.s32 0, %v298
    %v300 = vrot.slane %v295, %v299
    %v301 = vlaneseq
    %v302 = vshrl.u32 %v301, 7
    %v303 = vsub.s32 1, %v302
    %v304 = vrot.slane %v295, %v303
    %v371 = vunpack.c.l.b16 %v231
    %v372 = vunpack.c.h.b16 %v231
    %v373 = vunpack.c.l.b16 %v232
    %v374 = vunpack.c.h.b16 %v232
    %v375 = vunpack.c.l.b16 %v233
    %v376 = vunpack.c.h.b16 %v233
    %v377 = vunpack.c.l.b16 %v234
    %v378 = vunpack.c.h.b16 %v234
    %v379 = vunpack.c.l.b16 %v235
    %v380 = vunpack.c.h.b16 %v235
    %v381 = vunpack.c.l.b16 %v236
    %v382 = vunpack.c.h.b16 %v236
    %v383 = vunpack.c.l.b16 %v237
    %v384 = vunpack.c.h.b16 %v237
    %v385 = vunpack.c.l.b16 %v238
    %v386 = vunpack.c.h.b16 %v238
    %v387 = vunpack.c.l.b16 %v239
    %v388 = vunpack.c.h.b16 %v239
    %v389 = vunpack.c.l.b16 %v240
    %v390 = vunpack.c.h.b16 %v240
    %v391 = vunpack.c.l.b16 %v241
    %v392 = vunpack.c.h.b16 %v241
    %v393 = vunpack.c.l.b16 %v242
    %v394 = vunpack.c.h.b16 %v242
    %v395 = vunpack.c.l.b16 %v243
    %v396 = vunpack.c.h.b16 %v243
    %v397 = vunpack.c.l.b16 %v244
    %v398 = vunpack.c.h.b16 %v244
    %v399 = vunpack.c.l.b16 %v245
    %v400 = vunpack.c.h.b16 %v245
    %v401 = vunpack.c.l.b16 %v246
    %v402 = vunpack.c.h.b16 %v246
    %v403 = vunpack.c.l.b16 %v247
    %v404 = vunpack.c.h.b16 %v247
    %v405 = vunpack.c.l.b16 %v248
    %v406 = vunpack.c.h.b16 %v248
    %v407 = vunpack.c.l.b16 %v249
    %v408 = vunpack.c.h.b16 %v249
    %v409 = vunpack.c.l.b16 %v250
    %v410 = vunpack.c.h.b16 %v250
    %v411 = vunpack.c.l.b16 %v251
    %v412 = vunpack.c.h.b16 %v251
    %v413 = vunpack.c.l.b16 %v252
    %v414 = vunpack.c.h.b16 %v252
    %v415 = vunpack.c.l.b16 %v253
    %v416 = vunpack.c.h.b16 %v253
    %v417 = vunpack.c.l.b16 %v254
    %v418 = vunpack.c.h.b16 %v254
    %v419 = vunpack.c.l.b16 %v255
    %v420 = vunpack.c.h.b16 %v255
    %v421 = vunpack.c.l.b16 %v256
    %v422 = vunpack.c.h.b16 %v256
    %v423 = vunpack.c.l.b16 %v257
    %v424 = vunpack.c.h.b16 %v257
    %v425 = vunpack.c.l.b16 %v258
    %v426 = vunpack.c.h.b16 %v258
    %v427 = vunpack.c.l.b16 %v259
    %v428 = vunpack.c.h.b16 %v259
    %v429 = vunpack.c.l.b16 %v260
    %v430 = vunpack.c.h.b16 %v260
    %v431 = vunpack.c.l.b16 %v261
    %v432 = vunpack.c.h.b16 %v261
    %v433 = vunpack.c.l.b16 %v262
    %v434 = vunpack.c.h.b16 %v262
    %v435 = vunpack.c.l.b16 %v263
    %v436 = vunpack.c.h.b16 %v263
    %v437 = vunpack.c.l.b16 %v264
    %v438 = vunpack.c.h.b16 %v264
    %v439 = vunpack.c.l.b16 %v265
    %v440 = vunpack.c.h.b16 %v265
    %v441 = vunpack.c.l.b16 %v266
    %v442 = vunpack.c.h.b16 %v266
    %v443 = vunpack.c.l.b16 %v267
    %v444 = vunpack.c.h.b16 %v267
    %v445 = vunpack.c.l.b16 %v268
    %v446 = vunpack.c.h.b16 %v268
    %v447 = vunpack.c.l.b16 %v269
    %v448 = vunpack.c.h.b16 %v269
    %v449 = vunpack.c.l.b16 %v270
    %v450 = vunpack.c.h.b16 %v270
    %v451 = vunpack.c.l.b16 %v271
    %v452 = vunpack.c.h.b16 %v271
    %v453 = vunpack.c.l.b16 %v272
    %v454 = vunpack.c.h.b16 %v272
    %v455 = vunpack.c.l.b16 %v273
    %v456 = vunpack.c.h.b16 %v273
    %v457 = vunpack.c.l.b16 %v274
    %v458 = vunpack.c.h.b16 %v274
    %v459 = vunpack.c.l.b16 %v275
    %v460 = vunpack.c.h.b16 %v275
    %v461 = vunpack.c.l.b16 %v276
    %v462 = vunpack.c.h.b16 %v276
    %v463 = vunpack.c.l.b16 %v277
    %v464 = vunpack.c.h.b16 %v277
    %v465 = vunpack.c.l.b16 %v278
    %v466 = vunpack.c.h.b16 %v278
    %v467 = vunpack.c.l.b16 %v279
    %v468 = vunpack.c.h.b16 %v279
    %v469 = vunpack.c.l.b16 %v280
    %v470 = vunpack.c.h.b16 %v280
    %v471 = vunpack.c.l.b16 %v281
    %v472 = vunpack.c.h.b16 %v281
    %v473 = vunpack.c.l.b16 %v282
    %v474 = vunpack.c.h.b16 %v282
    %v475 = vunpack.c.l.b16 %v283
    %v476 = vunpack.c.h.b16 %v283
    %v477 = vunpack.c.l.b16 %v284
    %v478 = vunpack.c.h.b16 %v284
    %v479 = vunpack.c.l.b16 %v285
    %v480 = vunpack.c.h.b16 %v285
    %v481 = vunpack.c.l.b16 %v286
    %v482 = vunpack.c.h.b16 %v286
    %v483 = vunpack.c.l.b16 %v287
    %v484 = vunpack.c.h.b16 %v287
    %v485 = vunpack.c.l.b16 %v288
    %v486 = vunpack.c.h.b16 %v288
    %v487 = vunpack.c.l.b16 %v289
    %v488 = vunpack.c.h.b16 %v289
    %v489 = vunpack.c.l.b16 %v290
    %v490 = vunpack.c.h.b16 %v290
    %v491 = vunpack.c.l.b16 %v291
    %v492 = vunpack.c.h.b16 %v291
    %v493 = vunpack.c.l.b16 %v292
    %v494 = vunpack.c.h.b16 %v292
    %v495 = vunpack.c.l.b16 %v293
    %v496 = vunpack.c.h.b16 %v293
    %v497 = vunpack.c.l.b16 %v294
    %v498 = vunpack.c.h.b16 %v294
    %v499 = vpack.c.b16 %v373, %v371
    %v500 = vpack.c.b16 %v374, %v372
    %v501 = vpack.c.b16 %v377, %v375
    %v502 = vpack.c.b16 %v378, %v376
    %v503 = vpack.c.b16 %v381, %v379
    %v504 = vpack.c.b16 %v382, %v380
    %v505 = vpack.c.b16 %v385, %v383
    %v506 = vpack.c.b16 %v386, %v384
    %v507 = vpack.c.b16 %v389, %v387
    %v508 = vpack.c.b16 %v390, %v388
    %v509 = vpack.c.b16 %v393, %v391
    %v510 = vpack.c.b16 %v394, %v392
    %v511 = vpack.c.b16 %v397, %v395
    %v512 = vpack.c.b16 %v398, %v396
    %v513 = vpack.c.b16 %v401, %v399
    %v514 = vpack.c.b16 %v402, %v400
    %v515 = vpack.c.b16 %v405, %v403
    %v516 = vpack.c.b16 %v406, %v404
    %v517 = vpack.c.b16 %v409, %v407
    %v518 = vpack.c.b16 %v410, %v408
    %v519 = vpack.c.b16 %v413, %v411
    %v520 = vpack.c.b16 %v414, %v412
    %v521 = vpack.c.b16 %v417, %v415
    %v522 = vpack.c.b16 %v418, %v416
    %v523 = vpack.c.b16 %v421, %v419
    %v524 = vpack.c.b16 %v422, %v420
    %v525 = vpack.c.b16 %v425, %v423
    %v526 = vpack.c.b16 %v426, %v424
    %v527 = vpack.c.b16 %v429, %v427
    %v528 = vpack.c.b16 %v430, %v428
    %v529 = vpack.c.b16 %v433, %v431
    %v530 = vpack.c.b16 %v434, %v432
    %v531 = vpack.c.b16 %v437, %v435
    %v532 = vpack.c.b16 %v438, %v436
    %v533 = vpack.c.b16 %v441, %v439
    %v534 = vpack.c.b16 %v442, %v440
    %v535 = vpack.c.b16 %v445, %v443
    %v536 = vpack.c.b16 %v446, %v444
    %v537 = vpack.c.b16 %v449, %v447
    %v538 = vpack.c.b16 %v450, %v448
    %v539 = vpack.c.b16 %v453, %v451
    %v540 = vpack.c.b16 %v454, %v452
    %v541 = vpack.c.b16 %v457, %v455
    %v542 = vpack.c.b16 %v458, %v456
    %v543 = vpack.c.b16 %v461, %v459
    %v544 = vpack.c.b16 %v462, %v460
    %v545 = vpack.c.b16 %v465, %v463
    %v546 = vpack.c.b16 %v466, %v464
    %v547 = vpack.c.b16 %v469, %v467
    %v548 = vpack.c.b16 %v470, %v468
    %v549 = vpack.c.b16 %v473, %v471
    %v550 = vpack.c.b16 %v474, %v472
    %v551 = vpack.c.b16 %v477, %v475
    %v552 = vpack.c.b16 %v478, %v476
    %v553 = vpack.c.b16 %v481, %v479
    %v554 = vpack.c.b16 %v482, %v480
    %v555 = vpack.c.b16 %v485, %v483
    %v556 = vpack.c.b16 %v486, %v484
    %v557 = vpack.c.b16 %v489, %v487
    %v558 = vpack.c.b16 %v490, %v488
    %v559 = vpack.c.b16 %v493, %v491
    %v560 = vpack.c.b16 %v494, %v492
    %v561 = vpack.c.b16 %v497, %v495
    %v562 = vpack.c.b16 %v498, %v496
    %627 = vmatprep.subr.bf16.mxu0 %v514
    %628 = vmatpush1.bf16.msra.mxu0 %v513
    %629 = vmatprep.subr.bf16.mxu0 %v512
    %630 = vmatpush1.bf16.msra.mxu0 %v511
    %631 = vmatprep.subr.bf16.mxu0 %v510
    %632 = vmatpush1.bf16.msra.mxu0 %v509
    %633 = vmatprep.subr.bf16.mxu0 %v508
    %634 = vmatpush1.bf16.msra.mxu0 %v507
    %635 = vmatprep.subr.bf16.mxu0 %v506
    %636 = vmatpush1.bf16.msra.mxu0 %v505
    %637 = vmatprep.subr.bf16.mxu0 %v504
    %638 = vmatpush1.bf16.msra.mxu0 %v503
    %639 = vmatprep.subr.bf16.mxu0 %v502
    %640 = vmatpush1.bf16.msra.mxu0 %v501
    %641 = vmatprep.subr.bf16.mxu0 %v500
    %642 = vmatpush1.bf16.msra.mxu0 %v499
    %643 = vmatprep.subr.bf16.mxu0 %v530
    %644 = vmatpush2.bf16.msra.mxu0 %v529
    %645 = vmatprep.subr.bf16.mxu0 %v528
    %646 = vmatpush2.bf16.msra.mxu0 %v527
    %647 = vmatprep.subr.bf16.mxu0 %v526
    %648 = vmatpush2.bf16.msra.mxu0 %v525
    %649 = vmatprep.subr.bf16.mxu0 %v524
    %650 = vmatpush2.bf16.msra.mxu0 %v523
    %651 = vmatprep.subr.bf16.mxu0 %v522
    %652 = vmatpush2.bf16.msra.mxu0 %v521
    %653 = vmatprep.subr.bf16.mxu0 %v520
    %654 = vmatpush2.bf16.msra.mxu0 %v519
    %655 = vmatprep.subr.bf16.mxu0 %v518
    %656 = vmatpush2.bf16.msra.mxu0 %v517
    %657 = vmatprep.subr.bf16.mxu0 %v516
    %658 = vmatpush2.bf16.msra.mxu0 %v515
    %659 = vmatprep.mubr.bf16.mxu0 %v228
    %660 = vmatmul.mubr.bf16.gmra.mxu0 %v227
    %v661 = vpop.f32.mrf.mxu0
    %v662 = vadd.f32 %v300, %v661
    %v663 = vpop.f32.mrf.mxu0
    %v664 = vadd.f32 %v304, %v663
    %v665 = vpop.f32.mrf.mxu0
    %v666 = vpop.f32.mrf.mxu0
    %667 = vdwg.mxu0
    %668 = vmatprep.subr.bf16.mxu0 %v546
    %669 = vmatpush1.bf16.msra.mxu0 %v545
    %670 = vmatprep.subr.bf16.mxu0 %v544
    %671 = vmatpush1.bf16.msra.mxu0 %v543
    %672 = vmatprep.subr.bf16.mxu0 %v542
    %673 = vmatpush1.bf16.msra.mxu0 %v541
    %674 = vmatprep.subr.bf16.mxu0 %v540
    %675 = vmatpush1.bf16.msra.mxu0 %v539
    %676 = vmatprep.subr.bf16.mxu0 %v538
    %677 = vmatpush1.bf16.msra.mxu0 %v537
    %678 = vmatprep.subr.bf16.mxu0 %v536
    %679 = vmatpush1.bf16.msra.mxu0 %v535
    %680 = vmatprep.subr.bf16.mxu0 %v534
    %681 = vmatpush1.bf16.msra.mxu0 %v533
    %682 = vmatprep.subr.bf16.mxu0 %v532
    %683 = vmatpush1.bf16.msra.mxu0 %v531
    %684 = vmatprep.subr.bf16.mxu0 %v562
    %685 = vmatpush2.bf16.msra.mxu0 %v561
    %686 = vmatprep.subr.bf16.mxu0 %v560
    %687 = vmatpush2.bf16.msra.mxu0 %v559
    %688 = vmatprep.subr.bf16.mxu0 %v558
    %689 = vmatpush2.bf16.msra.mxu0 %v557
    %690 = vmatprep.subr.bf16.mxu0 %v556
    %691 = vmatpush2.bf16.msra.mxu0 %v555
    %692 = vmatprep.subr.bf16.mxu0 %v554
    %693 = vmatpush2.bf16.msra.mxu0 %v553
    %694 = vmatprep.subr.bf16.mxu0 %v552
    %695 = vmatpush2.bf16.msra.mxu0 %v551
    %696 = vmatprep.subr.bf16.mxu0 %v550
    %697 = vmatpush2.bf16.msra.mxu0 %v549
    %698 = vmatprep.subr.bf16.mxu0 %v548
    %699 = vmatpush2.bf16.msra.mxu0 %v547
    %700 = vmatprep.mubr.bf16.mxu0 %v230
    %701 = vmatmul.mubr.bf16.gmra.mxu0 %v229
    %v702 = vpop.f32.mrf.mxu0
    %v703 = vadd.f32 %v662, %v702
    %v704 = vpop.f32.mrf.mxu0
    %v705 = vadd.f32 %v664, %v704
    %v706 = vpop.f32.mrf.mxu0
    %v707 = vpop.f32.mrf.mxu0
    %708 = vdwg.mxu0
    %v709 = vmax.f32 %v703, 0.0
    %v710 = vmax.f32 %v705, 0.0
    %v711 = vpack.c.bf16 %v709, %v709
    %v712 = vpack.c.bf16 %v710, %v710
    %v713 = vld [vmem:[%s5] sm:$0xf]
    %v714 = vld [vmem:[%s5 + $0x4] sm:$0xf]
    %v715 = vld [vmem:[%s5 + $0x8] sm:$0xf]
    %v716 = vld [vmem:[%s5 + $0xc] sm:$0xf]
    %v717 = vld [vmem:[%s5 + $0x10] sm:$0xf]
    %v718 = vld [vmem:[%s5 + $0x14] sm:$0xf]
    %v719 = vld [vmem:[%s5 + $0x18] sm:$0xf]
    %v720 = vld [vmem:[%s5 + $0x1c] sm:$0xf]
    %v721 = vld [vmem:[%s5 + $0x20] sm:$0xf]
    %v722 = vld [vmem:[%s5 + $0x24] sm:$0xf]
    %v723 = vld [vmem:[%s5 + $0x28] sm:$0xf]
    %v724 = vld [vmem:[%s5 + $0x2c] sm:$0xf]
    %v725 = vld [vmem:[%s5 + $0x30] sm:$0xf]
    %v726 = vld [vmem:[%s5 + $0x34] sm:$0xf]
    %v727 = vld [vmem:[%s5 + $0x38] sm:$0xf]
    %v728 = vld [vmem:[%s5 + $0x3c] sm:$0xf]
    %v729 = vld [vmem:[%s5 + $0x40] sm:$0xf]
    %v730 = vld [vmem:[%s5 + $0x44] sm:$0xf]
    %v731 = vld [vmem:[%s5 + $0x48] sm:$0xf]
    %v732 = vld [vmem:[%s5 + $0x4c] sm:$0xf]
    %v733 = vld [vmem:[%s5 + $0x50] sm:$0xf]
    %v734 = vld [vmem:[%s5 + $0x54] sm:$0xf]
    %v735 = vld [vmem:[%s5 + $0x58] sm:$0xf]
    %v736 = vld [vmem:[%s5 + $0x5c] sm:$0xf]
    %v737 = vld [vmem:[%s5 + $0x60] sm:$0xf]
    %v738 = vld [vmem:[%s5 + $0x64] sm:$0xf]
    %v739 = vld [vmem:[%s5 + $0x68] sm:$0xf]
    %v740 = vld [vmem:[%s5 + $0x6c] sm:$0xf]
    %v741 = vld [vmem:[%s5 + $0x70] sm:$0xf]
    %v742 = vld [vmem:[%s5 + $0x74] sm:$0xf]
    %v743 = vld [vmem:[%s5 + $0x78] sm:$0xf]
    %v744 = vld [vmem:[%s5 + $0x7c] sm:$0xf]
    %v745 = vld [vmem:[#allocation7] sm:$0x1]
    %v747 = vlaneseq
    %v748 = vshrl.u32 %v747, 7
    %v749 = vsub.s32 0, %v748
    %v750 = vrot.slane %v745, %v749
    %v784 = vunpack.c.l.b16 %v713
    %v785 = vunpack.c.l.b16 %v714
    %v786 = vunpack.c.l.b16 %v715
    %v787 = vunpack.c.l.b16 %v716
    %v788 = vunpack.c.l.b16 %v717
    %v789 = vunpack.c.l.b16 %v718
    %v790 = vunpack.c.l.b16 %v719
    %v791 = vunpack.c.l.b16 %v720
    %v792 = vunpack.c.l.b16 %v721
    %v793 = vunpack.c.l.b16 %v722
    %v794 = vunpack.c.l.b16 %v723
    %v795 = vunpack.c.l.b16 %v724
    %v796 = vunpack.c.l.b16 %v725
    %v797 = vunpack.c.l.b16 %v726
    %v798 = vunpack.c.l.b16 %v727
    %v799 = vunpack.c.l.b16 %v728
    %v800 = vunpack.c.l.b16 %v729
    %v801 = vunpack.c.l.b16 %v730
    %v802 = vunpack.c.l.b16 %v731
    %v803 = vunpack.c.l.b16 %v732
    %v804 = vunpack.c.l.b16 %v733
    %v805 = vunpack.c.l.b16 %v734
    %v806 = vunpack.c.l.b16 %v735
    %v807 = vunpack.c.l.b16 %v736
    %v808 = vunpack.c.l.b16 %v737
    %v809 = vunpack.c.l.b16 %v738
    %v810 = vunpack.c.l.b16 %v739
    %v811 = vunpack.c.l.b16 %v740
    %v812 = vunpack.c.l.b16 %v741
    %v813 = vunpack.c.l.b16 %v742
    %v814 = vunpack.c.l.b16 %v743
    %v815 = vunpack.c.l.b16 %v744
    %v816 = vpack.c.b16 %v785, %v784
    %v817 = vpack.c.b16 %v787, %v786
    %v818 = vpack.c.b16 %v789, %v788
    %v819 = vpack.c.b16 %v791, %v790
    %v820 = vpack.c.b16 %v793, %v792
    %v821 = vpack.c.b16 %v795, %v794
    %v822 = vpack.c.b16 %v797, %v796
    %v823 = vpack.c.b16 %v799, %v798
    %v824 = vpack.c.b16 %v801, %v800
    %v825 = vpack.c.b16 %v803, %v802
    %v826 = vpack.c.b16 %v805, %v804
    %v827 = vpack.c.b16 %v807, %v806
    %v828 = vpack.c.b16 %v809, %v808
    %v829 = vpack.c.b16 %v811, %v810
    %v830 = vpack.c.b16 %v813, %v812
    %v831 = vpack.c.b16 %v815, %v814
    %848 = vmatprep.subr.bf16.mxu0 0
    %849 = vmatpush1.bf16.msra.mxu0 %v823
    %850 = vmatprep.subr.bf16.mxu0 0
    %851 = vmatpush1.bf16.msra.mxu0 %v822
    %852 = vmatprep.subr.bf16.mxu0 0
    %853 = vmatpush1.bf16.msra.mxu0 %v821
    %854 = vmatprep.subr.bf16.mxu0 0
    %855 = vmatpush1.bf16.msra.mxu0 %v820
    %856 = vmatprep.subr.bf16.mxu0 0
    %857 = vmatpush1.bf16.msra.mxu0 %v819
    %858 = vmatprep.subr.bf16.mxu0 0
    %859 = vmatpush1.bf16.msra.mxu0 %v818
    %860 = vmatprep.subr.bf16.mxu0 0
    %861 = vmatpush1.bf16.msra.mxu0 %v817
    %862 = vmatprep.subr.bf16.mxu0 0
    %863 = vmatpush1.bf16.msra.mxu0 %v816
    %864 = vmatprep.subr.bf16.mxu0 0
    %865 = vmatpush2.bf16.msra.mxu0 %v831
    %866 = vmatprep.subr.bf16.mxu0 0
    %867 = vmatpush2.bf16.msra.mxu0 %v830
    %868 = vmatprep.subr.bf16.mxu0 0
    %869 = vmatpush2.bf16.msra.mxu0 %v829
    %870 = vmatprep.subr.bf16.mxu0 0
    %871 = vmatpush2.bf16.msra.mxu0 %v828
    %872 = vmatprep.subr.bf16.mxu0 0
    %873 = vmatpush2.bf16.msra.mxu0 %v827
    %874 = vmatprep.subr.bf16.mxu0 0
    %875 = vmatpush2.bf16.msra.mxu0 %v826
    %876 = vmatprep.subr.bf16.mxu0 0
    %877 = vmatpush2.bf16.msra.mxu0 %v825
    %878 = vmatprep.subr.bf16.mxu0 0
    %879 = vmatpush2.bf16.msra.mxu0 %v824
    %880 = vmatprep.mubr.bf16.mxu0 %v712
    %881 = vmatmul.mubr.bf16.gmra.mxu0 %v711
    %v882 = vpop.f32.mrf.mxu0
    %v883 = vadd.f32 %v750, %v882
    %v884 = vpop.f32.mrf.mxu0
    %v885 = vpop.f32.mrf.mxu0
    %v886 = vpop.f32.mrf.mxu0
    %887 = vdwg.mxu0
    %v888 = vmax.f32 %v883, 0.0
    %v889 = vpack.c.bf16 %v888, %v888
    %v890 = vld [vmem:[%s7] sm:$0xf]
    %v891 = vld [vmem:[%s7 + $0x4] sm:$0xf]
    %v892 = vld [vmem:[%s7 + $0x8] sm:$0xf]
    %v893 = vld [vmem:[%s7 + $0xc] sm:$0xf]
    %v894 = vld [vmem:[%s7 + $0x10] sm:$0xf]
    %v895 = vld [vmem:[%s7 + $0x14] sm:$0xf]
    %v896 = vld [vmem:[%s7 + $0x18] sm:$0xf]
    %v897 = vld [vmem:[%s7 + $0x1c] sm:$0xf]
    %v898 = vld [vmem:[%s7 + $0x20] sm:$0xf]
    %v899 = vld [vmem:[%s7 + $0x24] sm:$0xf]
    %v900 = vld [vmem:[%s7 + $0x28] sm:$0xf]
    %v901 = vld [vmem:[%s7 + $0x2c] sm:$0xf]
    %v902 = vld [vmem:[%s7 + $0x30] sm:$0xf]
    %v903 = vld [vmem:[%s7 + $0x34] sm:$0xf]
    %v904 = vld [vmem:[%s7 + $0x38] sm:$0xf]
    %v905 = vld [vmem:[%s7 + $0x3c] sm:$0xf]
    %v906 = vld [vmem:[%s8] sm:$0x1]
    %v908 = vlaneseq
    %v909 = vshrl.u32 %v908, 7
    %v910 = vsub.s32 0, %v909
    %v911 = vrot.slane %v906, %v910
    %v929 = vunpack.c.l.b16 %v890
    %v930 = vunpack.c.l.b16 %v891
    %v931 = vunpack.c.l.b16 %v892
    %v932 = vunpack.c.l.b16 %v893
    %v933 = vunpack.c.l.b16 %v894
    %v934 = vunpack.c.l.b16 %v895
    %v935 = vunpack.c.l.b16 %v896
    %v936 = vunpack.c.l.b16 %v897
    %v937 = vunpack.c.l.b16 %v898
    %v938 = vunpack.c.l.b16 %v899
    %v939 = vunpack.c.l.b16 %v900
    %v940 = vunpack.c.l.b16 %v901
    %v941 = vunpack.c.l.b16 %v902
    %v942 = vunpack.c.l.b16 %v903
    %v943 = vunpack.c.l.b16 %v904
    %v944 = vunpack.c.l.b16 %v905
    %v945 = vpack.c.b16 %v930, %v929
    %v946 = vpack.c.b16 %v932, %v931
    %v947 = vpack.c.b16 %v934, %v933
    %v948 = vpack.c.b16 %v936, %v935
    %v949 = vpack.c.b16 %v938, %v937
    %v950 = vpack.c.b16 %v940, %v939
    %v951 = vpack.c.b16 %v942, %v941
    %v952 = vpack.c.b16 %v944, %v943
    %961 = vmatprep.subr.bf16.mxu0 0
    %962 = vmatpush1.bf16.msra.mxu0 %v952
    %963 = vmatprep.subr.bf16.mxu0 0
    %964 = vmatpush1.bf16.msra.mxu0 %v951
    %965 = vmatprep.subr.bf16.mxu0 0
    %966 = vmatpush1.bf16.msra.mxu0 %v950
    %967 = vmatprep.subr.bf16.mxu0 0
    %968 = vmatpush1.bf16.msra.mxu0 %v949
    %969 = vmatprep.subr.bf16.mxu0 0
    %970 = vmatpush1.bf16.msra.mxu0 %v948
    %971 = vmatprep.subr.bf16.mxu0 0
    %972 = vmatpush1.bf16.msra.mxu0 %v947
    %973 = vmatprep.subr.bf16.mxu0 0
    %974 = vmatpush1.bf16.msra.mxu0 %v946
    %975 = vmatprep.subr.bf16.mxu0 0
    %976 = vmatpush1.bf16.msra.mxu0 %v945
    %977 = vmatprep.subr.bf16.mxu0 0
    %978 = vmatpush2.bf16.msra.mxu0 0
    %979 = vmatprep.subr.bf16.mxu0 0
    %980 = vmatpush2.bf16.msra.mxu0 0
    %981 = vmatprep.subr.bf16.mxu0 0
    %982 = vmatpush2.bf16.msra.mxu0 0
    %983 = vmatprep.subr.bf16.mxu0 0
    %984 = vmatpush2.bf16.msra.mxu0 0
    %985 = vmatprep.subr.bf16.mxu0 0
    %986 = vmatpush2.bf16.msra.mxu0 0
    %987 = vmatprep.subr.bf16.mxu0 0
    %988 = vmatpush2.bf16.msra.mxu0 0
    %989 = vmatprep.subr.bf16.mxu0 0
    %990 = vmatpush2.bf16.msra.mxu0 0
    %991 = vmatprep.subr.bf16.mxu0 0
    %992 = vmatpush2.bf16.msra.mxu0 0
    %993 = vmatprep.mubr.bf16.mxu0 0
    %994 = vmatmul.mubr.bf16.gmra.mxu0 %v889
    %v995 = vpop.f32.mrf.mxu0
    %v996 = vadd.f32 %v911, %v995
    %v997 = vpop.f32.mrf.mxu0
    %v998 = vpop.f32.mrf.mxu0
    %v999 = vpop.f32.mrf.mxu0
    %1000 = vdwg.mxu0
    %v1001 = vmax.f32 %v996, 0.0
    %v1002 = vpack.c.bf16 %v1001, %v1001
    %v1003 = vld [vmem:[%s9] sm:$0xf]
    %v1004 = vld [vmem:[%s9 + $0x4] sm:$0xf]
    %v1005 = vld [vmem:[%s9 + $0x8] sm:$0xf]
    %v1006 = vld [vmem:[%s9 + $0xc] sm:$0xf]
    %v1007 = vld [vmem:[%s9 + $0x10] sm:$0xf]
    %v1008 = vld [vmem:[%s9 + $0x14] sm:$0xf]
    %v1009 = vld [vmem:[%s9 + $0x18] sm:$0xf]
    %v1010 = vld [vmem:[%s9 + $0x1c] sm:$0xf]
    %v1011 = vld [vmem:[%s10] sm:$0x1]
    %v1013 = vlaneseq
    %v1014 = vshrl.u32 %v1013, 7
    %v1015 = vsub.s32 0, %v1014
    %v1016 = vrot.slane %v1011, %v1015
    %v1026 = vunpack.c.l.b16 %v1003
    %v1027 = vunpack.c.l.b16 %v1004
    %v1028 = vunpack.c.l.b16 %v1005
    %v1029 = vunpack.c.l.b16 %v1006
    %v1030 = vunpack.c.l.b16 %v1007
    %v1031 = vunpack.c.l.b16 %v1008
    %v1032 = vunpack.c.l.b16 %v1009
    %v1033 = vunpack.c.l.b16 %v1010
    %v1034 = vpack.c.b16 %v1027, %v1026
    %v1035 = vpack.c.b16 %v1029, %v1028
    %v1036 = vpack.c.b16 %v1031, %v1030
    %v1037 = vpack.c.b16 %v1033, %v1032
    %vm1042 = vcmask 523264
    %v1044 = vsel %vm1042, %v1002, 0
    %1046 = vmatprep.subr.bf16.mxu0 0
    %1047 = vmatpush1.bf16.msra.mxu0 0
    %1048 = vmatprep.subr.bf16.mxu0 0
    %1049 = vmatpush1.bf16.msra.mxu0 0
    %1050 = vmatprep.subr.bf16.mxu0 0
    %1051 = vmatpush1.bf16.msra.mxu0 0
    %1052 = vmatprep.subr.bf16.mxu0 0
    %1053 = vmatpush1.bf16.msra.mxu0 0
    %1054 = vmatprep.subr.bf16.mxu0 0
    %1055 = vmatpush1.bf16.msra.mxu0 %v1037
    %1056 = vmatprep.subr.bf16.mxu0 0
    %1057 = vmatpush1.bf16.msra.mxu0 %v1036
    %1058 = vmatprep.subr.bf16.mxu0 0
    %1059 = vmatpush1.bf16.msra.mxu0 %v1035
    %1060 = vmatprep.subr.bf16.mxu0 0
    %1061 = vmatpush1.bf16.msra.mxu0 %v1034
    %1062 = vmatprep.subr.bf16.mxu0 0
    %1063 = vmatpush2.bf16.msra.mxu0 0
    %1064 = vmatprep.subr.bf16.mxu0 0
    %1065 = vmatpush2.bf16.msra.mxu0 0
    %1066 = vmatprep.subr.bf16.mxu0 0
    %1067 = vmatpush2.bf16.msra.mxu0 0
    %1068 = vmatprep.subr.bf16.mxu0 0
    %1069 = vmatpush2.bf16.msra.mxu0 0
    %1070 = vmatprep.subr.bf16.mxu0 0
    %1071 = vmatpush2.bf16.msra.mxu0 0
    %1072 = vmatprep.subr.bf16.mxu0 0
    %1073 = vmatpush2.bf16.msra.mxu0 0
    %1074 = vmatprep.subr.bf16.mxu0 0
    %1075 = vmatpush2.bf16.msra.mxu0 0
    %1076 = vmatprep.subr.bf16.mxu0 0
    %1077 = vmatpush2.bf16.msra.mxu0 0
    %1078 = vmatprep.mubr.bf16.mxu0 0
    %1079 = vmatmul.mubr.bf16.gmra.mxu0 %v1044
    %v1080 = vpop.f32.mrf.mxu0
    %v1081 = vadd.f32 %v1016, %v1080
    %v1082 = vpop.f32.mrf.mxu0
    %v1083 = vpop.f32.mrf.mxu0
    %v1084 = vpop.f32.mrf.mxu0
    %1085 = vdwg.mxu0
    %vm1086 = vcmask 31744
    %1087 = vst.msk [vmem:[%s11] sm:$0xff] %vm1086, %v1081
    // Predicated region
    $region62: #{neural_network_forward.1} parent=1 // pred_check
      _
    $region63: #{neural_network_forward.1} parent=1 // pred_check_branch
      %1089 = sbr.rel (0) target = $region65
    $region64: #{neural_network_forward.1} parent=1 // pred_region
      _
    $region65: #{neural_network_forward.1} parent=1 // pred_fallthru
      _
    // Predicated region
    $region66: #{neural_network_forward.1} parent=1 // pred_check
      _
    $region67: #{neural_network_forward.1} parent=1 // pred_check_branch
      %1091 = sbr.rel (0) target = $region69
    $region68: #{neural_network_forward.1} parent=1 // pred_region
      _
    $region69: #{neural_network_forward.1} parent=1 // pred_fallthru
      _
    %1092 = vsyncpa [#allocation3], 1
    %1093 = vsyncpa [#allocation5], 1
    %1094 = vsyncpa [#allocation8], 1

</llo_original>
